<compile_context>
chip_gen: v7x
topology: tpu7x:2x2x1
jax: 0.10.0
libtpu: 0.0.40
codegen_flags: <defaults>
</compile_context>

<pallas_src>
import jax
import jax.numpy as jnp
from jax.experimental import pallas as pl
from jax.experimental.pallas import tpu as pltpu


def _round_up(x: int, m: int) -> int:
    return ((x + m - 1) // m) * m


def tip_kernel(ba_ref, feats_ref, cache_ref, labels_ref, tv_ref, out_ref):
    s = pl.program_id(0)  # reduction split (sharded across TensorCores on v7x)
    k = pl.program_id(2)  # reduction step within this split (last grid axis)

    beta = ba_ref[0]
    c0 = ba_ref[1]        # log(alpha) - beta  (alpha folded into the exponent)

    # Output block is resident across the reduction axis. Split 0 starts from tv_logits;
    # any other split starts from zero (partials are summed in the wrapper).
    @pl.when(k == 0)
    def _():
        out_ref[...] = jnp.zeros_like(out_ref)

    @pl.when((k == 0) & (s == 0))
    def _():
        out_ref[...] += tv_ref[...]

    # affinity tile: (tb, tk) = (tb, D) @ (D, tk) on the natural (D, N) cache layout,
    # bf16 inputs with f32 MXU accumulation — no transpose anywhere.
    aff = jnp.dot(feats_ref[...], cache_ref[...], preferred_element_type=jnp.float32)

    # exp(-(beta - beta*aff)) * alpha == exp(beta*aff + (log(alpha) - beta))
    p = jnp.exp(beta * aff + c0).astype(jnp.bfloat16)

    # One-hot labels are streamed as int8 (half the HBM bytes of bf16); the VPU upcast is
    # hidden under the DMA of the next tile.  Padded cache columns give nonzero p but are
    # nulled by the all-zero padded one-hot rows (padding preserved exactly in int8).
    lbl = labels_ref[...].astype(jnp.float32).astype(jnp.bfloat16)

    # Accumulate alpha * cache_logits directly into the resident f32 output block.
    out_ref[...] += jnp.dot(p, lbl, preferred_element_type=jnp.float32)


def tip_forward(beta_alpha, feats, features_cache, labels_onehot, tv_logits,
                *, tk=2048, tb=None, reduction_splits=None,
                vmem_budget_bytes=48 * 1024 * 1024):
    """TIP-Adapter head.

    beta_alpha:     (2,)  f32    — [beta, alpha]   (alpha must be > 0, as in TIP-Adapter)
    feats:          (B, D)       — backbone features
    features_cache: (D, N_cache) — cached shot features (adapter.weight == its transpose)
    labels_onehot:  (N_cache, C)
    tv_logits:      (B, C)
    """
    B, D = feats.shape
    Dc, N = features_cache.shape
    assert D == Dc
    Nl, C = labels_onehot.shape
    assert Nl == N
    assert tv_logits.shape == (B, C)

    # Lane-dense padded sizes (zero padding is exact: padded D columns add 0 to the
    # affinity, padded cache shots have all-zero one-hot rows, padded B/C are sliced off).
    D_pad = _round_up(D, 128)
    C_pad = _round_up(C, 128)

    # Reduction tile over N_cache: multiple of 128, capped at the padded cache width.
    tk = max(128, (int(tk) // 128) * 128)
    tk = min(tk, _round_up(N, 128))

    # Batch tile: a single tile for the whole batch whenever it fits (every additional
    # batch tile re-streams the full cache + labels from HBM); multiple of 16 so the bf16
    # feats block is sublane-dense.
    if tb is None:
        tb = min(_round_up(B, 16), 512)
    else:
        tb = max(16, (int(tb) // 16) * 16)
        tb = min(tb, _round_up(B, 16))

    # Double-buffered working set + per-step intermediates (conservative estimate).
    def working_set(tb_, tk_):
        blocks = (tb_ * D_pad * 2        # feats   bf16
                  + D_pad * tk_ * 2      # cache   bf16
                  + tk_ * C_pad * 1      # labels  int8
                  + tb_ * C_pad * 4      # tv      f32
                  + tb_ * C_pad * 4)     # out     f32 accumulator
        interm = (tb_ * tk_ * 6          # affinity f32 + p bf16
                  + tk_ * C_pad * 6)     # labels upcast f32 + bf16
        return 2 * blocks + interm

    # Shrink tk first (then tb) until the working set fits the VMEM budget.
    while working_set(tb, tk) > vmem_budget_bytes and tk > 512:
        tk = max(512, ((tk // 2) // 128) * 128)
    while working_set(tb, tk) > vmem_budget_bytes and tb > 16:
        tb = max(16, ((tb // 2) // 16) * 16)

    B_pad = pl.cdiv(B, tb) * tb
    nb = B_pad // tb

    # 2-way reduction split over N_cache (v7x: second TensorCore streams the other half of
    # the cache). Only when the batch axis has a single tile (otherwise it already feeds
    # both cores) and there are >= 2 reduction steps (so small caches are not re-padded).
    k_steps_total = pl.cdiv(N, tk)
    if reduction_splits is None:
        reduction_splits = 2 if (nb == 1 and k_steps_total >= 2) else 1
    reduction_splits = max(1, int(reduction_splits))
    k_per_split = pl.cdiv(k_steps_total, reduction_splits)
    N_pad = reduction_splits * k_per_split * tk

    def pad2(x, rows, cols):
        pr, pc = rows - x.shape[0], cols - x.shape[1]
        if pr or pc:
            x = jnp.pad(x, ((0, pr), (0, pc)))
        return x

    # bf16 streaming of the big operands (f32 accumulation inside the kernel); labels in
    # int8 (0/1 exact) to halve their HBM stream.
    feats_p = pad2(feats, B_pad, D_pad).astype(jnp.bfloat16)
    cache_p = pad2(features_cache, D_pad, N_pad).astype(jnp.bfloat16)
    labels_p = pad2(labels_onehot, N_pad, C_pad).astype(jnp.int8)
    tv_p = pad2(tv_logits, B_pad, C_pad).astype(jnp.float32)

    # [beta, log(alpha) - beta]  — alpha folded into the exponent (requires alpha > 0).
    ba = jnp.stack([beta_alpha[0], jnp.log(beta_alpha[1]) - beta_alpha[0]]).astype(jnp.float32)

    grid = (reduction_splits, nb, k_per_split)

    vmem_limit = int(min(max(working_set(tb, tk) + (8 << 20), 32 << 20), 64 << 20))

    cost = pl.CostEstimate(
        flops=2 * B_pad * D_pad * N_pad + 2 * B_pad * N_pad * C_pad,
        transcendentals=B_pad * N_pad,
        bytes_accessed=(B_pad * D_pad * 2
                        + nb * D_pad * N_pad * 2      # cache re-read once per batch tile
                        + nb * N_pad * C_pad * 1      # labels (int8)
                        + B_pad * C_pad * 4           # tv_logits
                        + reduction_splits * B_pad * C_pad * 4),
    )

    out_parts = pl.pallas_call(
        tip_kernel,
        out_shape=jax.ShapeDtypeStruct((reduction_splits, B_pad, C_pad), jnp.float32),
        grid_spec=pltpu.PrefetchScalarGridSpec(
            num_scalar_prefetch=0,
            grid=grid,
            in_specs=[
                pl.BlockSpec(memory_space=pltpu.SMEM),                    # [beta, log(alpha)-beta]
                pl.BlockSpec((tb, D_pad), lambda s, b, k: (b, 0)),        # feats (resident per b)
                pl.BlockSpec((D_pad, tk),
                             lambda s, b, k: (0, s * k_per_split + k)),   # cache tile, native layout
                pl.BlockSpec((tk, C_pad),
                             lambda s, b, k: (s * k_per_split + k, 0)),   # one-hot labels (int8)
                pl.BlockSpec((tb, C_pad), lambda s, b, k: (b, 0)),        # tv_logits (resident)
            ],
            out_specs=pl.BlockSpec((None, tb, C_pad),
                                   lambda s, b, k: (s, b, 0)),            # resident f32 accumulator
        ),
        compiler_params=pltpu.CompilerParams(
            dimension_semantics=("parallel", "parallel", "arbitrary"),
            vmem_limit_bytes=vmem_limit,
        ),
        cost_estimate=cost,
    )(ba, feats_p, cache_p, labels_p, tv_p)

    out = out_parts[0] if reduction_splits == 1 else out_parts.sum(axis=0)
    return out[:B, :C]


if __name__ == "__main__":
    # Small deterministic setup mirroring TIPWrapper.__init__ shapes.
    B = 16         # batch
    D = 256        # feature dim
    N_cache = 300  # number of cached shots (exercises N padding and multiple reduction steps)
    C = 10         # num classes (padded to 128 inside the wrapper)

    key = jax.random.PRNGKey(0)
    k1, k2, k3, k4 = jax.random.split(key, 4)

    # features_cache after the permute in __init__ is (D, N_cache); adapter.weight is its
    # transpose.  TIP-Adapter uses L2-normalized features, so normalize (keeps exp bounded).
    features_cache = jax.random.normal(k1, (D, N_cache), dtype=jnp.float32)
    features_cache = features_cache / jnp.linalg.norm(features_cache, axis=0, keepdims=True)

    labels = jax.random.randint(k2, (N_cache,), 0, C)
    labels_onehot = jax.nn.one_hot(labels, C, dtype=jnp.float32)

    beta_alpha = jnp.array([1.0, 2.0], dtype=jnp.float32)  # as in __init__

    feats = jax.random.normal(k3, (B, D), dtype=jnp.float32)
    feats = feats / jnp.linalg.norm(feats, axis=1, keepdims=True)
    tv_logits = jax.random.normal(k4, (B, C), dtype=jnp.float32)

    # Reference mirroring the kernel's bf16 streaming + f32 accumulation.  (The fp32
    # PyTorch module differs from this by ~1e-2 relative due to bf16 streaming.)
    bf, f32 = jnp.bfloat16, jnp.float32
    hi = jax.lax.Precision.HIGHEST
    beta, alpha = beta_alpha[0], beta_alpha[1]
    aff = jnp.dot(feats.astype(bf).astype(f32),
                  features_cache.astype(bf).astype(f32), precision=hi)
    p = (jnp.exp(beta * (aff - 1.0)) * alpha).astype(bf).astype(f32)
    ref = jnp.dot(p, labels_onehot.astype(bf).astype(f32), precision=hi) + tv_logits

    # tk=128 so this small demo runs several reduction steps and (since B fits one batch
    # tile) exercises the 2-way reduction split; the second call checks the unsplit path.
    out = tip_forward(beta_alpha, feats, features_cache, labels_onehot, tv_logits, tk=128)
    out = jax.block_until_ready(out)
    assert out.shape == (B, C)
    assert jnp.allclose(out, ref, rtol=2e-2, atol=2e-2), "mismatch vs reference (split path)"

    out1 = tip_forward(beta_alpha, feats, features_cache, labels_onehot, tv_logits,
                       tk=128, reduction_splits=1)
    out1 = jax.block_until_ready(out1)
    assert out1.shape == (B, C)
    assert jnp.allclose(out1, ref, rtol=2e-2, atol=2e-2), "mismatch vs reference (unsplit path)"

    print("KERNEL_OK")
</pallas_src>

<mosaic_0001>
module attributes {stable_mosaic.version = 11 : i64} {
  func.func @tip_kernel(%arg0: i32, %arg1: i32, %arg2: i32, %arg3: memref<2xf32, #tpu.memory_space<smem>>, %arg4: memref<16x256xbf16, #tpu.memory_space<vmem>>, %arg5: memref<256x128xbf16, #tpu.memory_space<vmem>>, %arg6: memref<128x128xi8, #tpu.memory_space<vmem>>, %arg7: memref<16x128xf32, #tpu.memory_space<vmem>>, %arg8: memref<1x16x128xf32, #tpu.memory_space<vmem>>) attributes {dimension_semantics = [#tpu.dimension_semantics<parallel>, #tpu.dimension_semantics<parallel>, #tpu.dimension_semantics<arbitrary>], iteration_bounds = array<i64: 2, 1, 2>, scalar_prefetch = 0 : i64, scratch_operands = 0 : i64, tpu.core_type = #tpu.core_type<tc>, window_params = [{transform_indices = @transform_0, window_bounds = array<i64: 2>}, {transform_indices = @transform_1, window_bounds = array<i64: 16, 256>}, {transform_indices = @transform_2, window_bounds = array<i64: 256, 128>}, {transform_indices = @transform_3, window_bounds = array<i64: 128, 128>}, {transform_indices = @transform_4, window_bounds = array<i64: 16, 128>}, {transform_indices = @transform_5, window_bounds = array<i64: 1, 16, 128>}]} {
    %c0 = arith.constant 0 : index
    %0 = memref.load %arg3[%c0] : memref<2xf32, #tpu.memory_space<smem>>
    %c1 = arith.constant 1 : index
    %1 = memref.load %arg3[%c1] : memref<2xf32, #tpu.memory_space<smem>>
    %c0_i32 = arith.constant 0 : i32
    %2 = arith.cmpi eq, %arg2, %c0_i32 : i32
    %3 = arith.extui %2 : i1 to i32
    %c0_i32_0 = arith.constant 0 : i32
    %4 = arith.cmpi ne, %3, %c0_i32_0 : i32
    scf.if %4 {
      %cst_17 = arith.constant 0.000000e+00 : f32
      %29 = vector.broadcast %cst_17 : f32 to vector<16x128xf32>
      %c0_18 = arith.constant 0 : index
      %c0_19 = arith.constant 0 : index
      %c0_20 = arith.constant 0 : index
      %30 = vector.load %arg8[%c0_18, %c0_19, %c0_20] : memref<1x16x128xf32, #tpu.memory_space<vmem>>, vector<1x16x128xf32>
      %31 = vector.shape_cast %30 : vector<1x16x128xf32> to vector<16x128xf32>
      %32 = vector.shape_cast %29 : vector<16x128xf32> to vector<1x16x128xf32>
      tpu.vector_store %arg8[%c0_18, %c0_19, %c0_20], %32 {strides = array<i32>} : memref<1x16x128xf32, #tpu.memory_space<vmem>>, vector<1x16x128xf32>,
    } else {
    }
    %c0_i32_1 = arith.constant 0 : i32
    %5 = arith.cmpi eq, %arg2, %c0_i32_1 : i32
    %c0_i32_2 = arith.constant 0 : i32
    %6 = arith.cmpi eq, %arg0, %c0_i32_2 : i32
    %7 = arith.andi %5, %6 : i1
    %8 = arith.extui %7 : i1 to i32
    %c0_i32_3 = arith.constant 0 : i32
    %9 = arith.cmpi ne, %8, %c0_i32_3 : i32
    scf.if %9 {
      %c0_17 = arith.constant 0 : index
      %c0_18 = arith.constant 0 : index
      %c0_19 = arith.constant 0 : index
      %29 = vector.load %arg8[%c0_17, %c0_18, %c0_19] : memref<1x16x128xf32, #tpu.memory_space<vmem>>, vector<1x16x128xf32>
      %30 = vector.shape_cast %29 : vector<1x16x128xf32> to vector<16x128xf32>
      %c0_20 = arith.constant 0 : index
      %c0_21 = arith.constant 0 : index
      %31 = vector.load %arg7[%c0_20, %c0_21] : memref<16x128xf32, #tpu.memory_space<vmem>>, vector<16x128xf32>
      %32 = arith.addf %30, %31 : vector<16x128xf32>
      %c0_22 = arith.constant 0 : index
      %c0_23 = arith.constant 0 : index
      %c0_24 = arith.constant 0 : index
      %33 = vector.load %arg8[%c0_22, %c0_23, %c0_24] : memref<1x16x128xf32, #tpu.memory_space<vmem>>, vector<1x16x128xf32>
      %34 = vector.shape_cast %33 : vector<1x16x128xf32> to vector<16x128xf32>
      %35 = vector.shape_cast %32 : vector<16x128xf32> to vector<1x16x128xf32>
      tpu.vector_store %arg8[%c0_22, %c0_23, %c0_24], %35 {strides = array<i32>} : memref<1x16x128xf32, #tpu.memory_space<vmem>>, vector<1x16x128xf32>,
    } else {
    }
    %c0_4 = arith.constant 0 : index
    %c0_5 = arith.constant 0 : index
    %10 = vector.load %arg4[%c0_4, %c0_5] : memref<16x256xbf16, #tpu.memory_space<vmem>>, vector<16x256xbf16>
    %c0_6 = arith.constant 0 : index
    %c0_7 = arith.constant 0 : index
    %11 = vector.load %arg5[%c0_6, %c0_7] : memref<256x128xbf16, #tpu.memory_space<vmem>>, vector<256x128xbf16>
    %cst = arith.constant dense<0.000000e+00> : vector<16x128xf32>
    %12 = tpu.matmul %10, %11, %cst {dimension_numbers = #tpu.dot_dimension_numbers<[1], [0], [0], [1], [0, 0, 1, 1], [], []>} : vector<16x256xbf16>, vector<256x128xbf16>, vector<16x128xf32> -> vector<16x128xf32>
    %13 = vector.broadcast %0 : f32 to vector<16x128xf32>
    %14 = arith.mulf %13, %12 : vector<16x128xf32>
    %15 = vector.broadcast %1 : f32 to vector<16x128xf32>
    %16 = arith.addf %14, %15 : vector<16x128xf32>
    %17 = math.exp %16 : vector<16x128xf32>
    %18 = arith.truncf %17 : vector<16x128xf32> to vector<16x128xbf16>
    %c0_8 = arith.constant 0 : index
    %c0_9 = arith.constant 0 : index
    %19 = vector.load %arg6[%c0_8, %c0_9] : memref<128x128xi8, #tpu.memory_space<vmem>>, vector<128x128xi8>
    %20 = arith.sitofp %19 : vector<128x128xi8> to vector<128x128xf32>
    %21 = arith.truncf %20 : vector<128x128xf32> to vector<128x128xbf16>
    %c0_10 = arith.constant 0 : index
    %c0_11 = arith.constant 0 : index
    %c0_12 = arith.constant 0 : index
    %22 = vector.load %arg8[%c0_10, %c0_11, %c0_12] : memref<1x16x128xf32, #tpu.memory_space<vmem>>, vector<1x16x128xf32>
    %23 = vector.shape_cast %22 : vector<1x16x128xf32> to vector<16x128xf32>
    %cst_13 = arith.constant dense<0.000000e+00> : vector<16x128xf32>
    %24 = tpu.matmul %18, %21, %cst_13 {dimension_numbers = #tpu.dot_dimension_numbers<[1], [0], [0], [1], [0, 0, 1, 1], [], []>} : vector<16x128xbf16>, vector<128x128xbf16>, vector<16x128xf32> -> vector<16x128xf32>
    %25 = arith.addf %23, %24 : vector<16x128xf32>
    %c0_14 = arith.constant 0 : index
    %c0_15 = arith.constant 0 : index
    %c0_16 = arith.constant 0 : index
    %26 = vector.load %arg8[%c0_14, %c0_15, %c0_16] : memref<1x16x128xf32, #tpu.memory_space<vmem>>, vector<1x16x128xf32>
    %27 = vector.shape_cast %26 : vector<1x16x128xf32> to vector<16x128xf32>
    %28 = vector.shape_cast %25 : vector<16x128xf32> to vector<1x16x128xf32>
    tpu.vector_store %arg8[%c0_14, %c0_15, %c0_16], %28 {strides = array<i32>} : memref<1x16x128xf32, #tpu.memory_space<vmem>>, vector<1x16x128xf32>,
    return
  }
  func.func @transform_0(%arg0: i32, %arg1: i32, %arg2: i32) -> i32 {
    %c0_i32 = arith.constant 0 : i32
    %c0_i32_0 = arith.constant 0 : i32
    return %c0_i32 : i32
  }
  func.func @transform_1(%arg0: i32, %arg1: i32, %arg2: i32) -> (i32, i32) {
    %c0_i32 = arith.constant 0 : i32
    %c0_i32_0 = arith.constant 0 : i32
    return %arg1, %c0_i32 : i32, i32
  }
  func.func @transform_2(%arg0: i32, %arg1: i32, %arg2: i32) -> (i32, i32) {
    %c2_i32 = arith.constant 2 : i32
    %0 = arith.muli %arg0, %c2_i32 : i32
    %1 = arith.addi %0, %arg2 : i32
    %c0_i32 = arith.constant 0 : i32
    %c0_i32_0 = arith.constant 0 : i32
    return %c0_i32, %1 : i32, i32
  }
  func.func @transform_3(%arg0: i32, %arg1: i32, %arg2: i32) -> (i32, i32) {
    %c2_i32 = arith.constant 2 : i32
    %0 = arith.muli %arg0, %c2_i32 : i32
    %1 = arith.addi %0, %arg2 : i32
    %c0_i32 = arith.constant 0 : i32
    %c0_i32_0 = arith.constant 0 : i32
    return %1, %c0_i32 : i32, i32
  }
  func.func @transform_4(%arg0: i32, %arg1: i32, %arg2: i32) -> (i32, i32) {
    %c0_i32 = arith.constant 0 : i32
    %c0_i32_0 = arith.constant 0 : i32
    return %arg1, %c0_i32 : i32, i32
  }
  func.func @transform_5(%arg0: i32, %arg1: i32, %arg2: i32) -> (i32, i32, i32) {
    %c0_i32 = arith.constant 0 : i32
    %c0_i32_0 = arith.constant 0 : i32
    return %arg0, %arg1, %c0_i32 : i32, i32, i32
  }
}

</mosaic_0001>

<llo_original>
// kernel: tpu_custom_call.1
$region0: #{tpu_custom_call.1}
  #allocation0 [shape = 'u32[]', space=smem, size = 0x4, offset = 0x4, fixed_abs, tag = 'smem constant byte address 0x4 - core index']
  #allocation1 [shape = 'u32[144,128]{1,0:T(1,128)}', space=vmem, size = 0x12000, scoped, tag = 'internal scratch']
  %s0 = inlined_call_operand.hbm [shape: f32[2], index: 0, kind: input, shape index: {}]
  %s1 = inlined_call_operand.hbm [shape: bf16[16,256], index: 1, kind: input, shape index: {}]
  %s2 = inlined_call_operand.hbm [shape: bf16[256,512], index: 2, kind: input, shape index: {}]
  %s3 = inlined_call_operand.hbm [shape: s8[512,128], index: 3, kind: input, shape index: {}]
  %s4 = inlined_call_operand.hbm [shape: f32[16,128], index: 4, kind: input, shape index: {}]
  %s5 = inlined_call_operand.hbm [shape: f32[2,16,128], index: 5, kind: output, shape index: {}]
  %s6 = sld [smem:[#allocation0]]
  $region81: #{tpu_custom_call.1} parent=0
    _
  %s8 = ssub.s32 1, %s6
  %s9 = scalar_select 0, %s8, %s6
  $region1: #{tpu_custom_call.1} parent=0
    #allocation2 [shape = 'u8[512]{0}', space=smem, size = 0x200, scoped, tag = 'input window, operand 0, single buffered']
    #allocation3 [shape = 's32[2]{0}', space=sflag, size = 0x8, scoped, tag = 'scoped memory for tpu_custom_call.1']
    #allocation4 [shape = 's32[2]{0}', space=sflag, size = 0x8, scoped, tag = 'scoped memory for tpu_custom_call.1']
    #allocation5 [shape = 's32[2]{0}', space=sflag, size = 0x8, scoped, tag = 'scoped memory for tpu_custom_call.1']
    #allocation6 [shape = 'u8[8192]{0}', space=vmem, size = 0x2000, scoped, tag = 'input window, operand 1, single buffered']
    #allocation7 [shape = 'u8[131072]{0}', space=vmem, size = 0x20000, scoped, tag = 'input window, operand 2']
    #allocation8 [shape = 's32[2]{0}', space=sflag, size = 0x8, scoped, tag = 'scoped memory for tpu_custom_call.1']
    #allocation9 [shape = 'u8[32768]{0}', space=vmem, size = 0x8000, scoped, tag = 'input window, operand 3']
    #allocation10 [shape = 'u8[8192]{0}', space=vmem, size = 0x2000, scoped, tag = 'input window, operand 4, single buffered']
    #allocation11 [shape = 's32[1]{0}', space=sflag, size = 0x4, scoped, tag = 'scoped memory for tpu_custom_call.1']
    #allocation12 [shape = 'u8[16384]{0}', space=vmem, size = 0x4000, scoped, tag = 'output window, operand 0']
    %10 = vsyncpa [#allocation5], 0
    %11 = vsyncpa [#allocation3], 0
    %12 = vsyncpa [#allocation8], 0
    %s13 = scalar_lea.sflag [#allocation8], 1
    %14 = vsyncpa %s13, 0
    %15 = vsyncpa [#allocation11], 0
    %16 = vsyncpa [#allocation4], 0
    %s17 = scalar_lea.sflag [#allocation4], 1
    %18 = vsyncpa %s17, 0
    loop: start=0, step=1, limit=6
    $region2: #{tpu_custom_call.1} parent=1 // loop_pre_header
      _
    $region3: #{tpu_custom_call.1} parent=1 // loop_header
      %s20 = sphi 0, %s24
      %p21 = scmp.ge.s32.totalorder %s20, 6
      %s27 = sphi 0, %s46
      %s28 = sphi 0, %s42
      %s29 = sphi 0, %s38
      %s30 = sphi 0, %s27
      %s31 = sphi 0, %s28
      %s32 = sphi 0, %s29
      %s33 = sphi 0, %s30
      %s34 = sphi 0, %s31
      %s35 = sphi 0, %s32
      %s47 = sphi 0, %s47
      %s49 = sphi 0, %s47
      %s50 = sphi 0, %s49
      %s64 = sphi 0, %s50
      %s70 = sphi 0, %s72
      %s73 = sphi 0, %s70
      %s74 = sphi 0, %s73
      %s90 = sphi 0, %s74
      %s100 = sphi 0, %s102
      %s103 = sphi 0, %s100
      %s104 = sphi 0, %s103
      %s120 = sphi 0, %s104
      %s130 = sphi 0, %s132
      %s133 = sphi 0, %s130
      %s134 = sphi 0, %s133
      %s150 = sphi 0, %s134
      %s156 = sphi 0, %s158
      %s159 = sphi 0, %s156
      %s160 = sphi 0, %s159
      %s176 = sphi 0, %s160
      %s184 = sphi 0, %s186
      %s187 = sphi 0, %s184
      %s188 = sphi 0, %s187
      %s204 = sphi 0, %s188
    $region4: #{tpu_custom_call.1} parent=1 // loop_header_branch
      %23 = sbr.rel (%p21) target = $region8
    $region5: #{tpu_custom_call.1} parent=1 // loop_body
      %s25 = ssub.s32 %s20, 1
      %s26 = ssub.s32 %s20, 2
      %s36 = sadd.s32 1, %s29
      %p37 = scmp.ge.s32.totalorder %s36, 2
      %s38 = scalar_select %p37, 0, %s36
      %s39 = sadd.s32 1, %s28
      %s40 = scalar_select %p37, %s39, %s28
      %p41 = scmp.ge.s32.totalorder %s40, 1
      %s42 = scalar_select %p41, 0, %s40
      %s43 = sadd.s32 1, %s27
      %s44 = scalar_select %p41, %s43, %s27
      %p45 = scmp.ge.s32.totalorder %s44, 2
      %s46 = scalar_select %p45, 0, %s44
      %s48 = sadd.s32 %s47, 1
      %p51 = scmp.eq.s32.totalorder %s20, 3
      %p52 = scmp.ne.s32.totalorder %s47, %s49
      %p53 = scmp.eq.s32.totalorder %s20, 0
      %p54 = por %p52, %p53
      %p55 = scmp.ne.s32.totalorder %s47, %s49
      %p56 = scmp.eq.s32.totalorder %s25, 3
      %p57 = por %p55, %p56
      %p58 = scmp.ne.s32.totalorder %s49, %s50
      %p59 = scmp.eq.s32.totalorder %s25, 0
      %p60 = por %p58, %p59
      %p61 = scmp.ne.s32.totalorder %s49, %s50
      %p62 = scmp.eq.s32.totalorder %s26, 3
      %p63 = por %p61, %p62
      %p65 = scmp.ne.s32.totalorder %s50, %s64
      %p66 = scmp.eq.s32.totalorder %s26, 0
      %p67 = por %p65, %p66
      %s68 = ssub.s32 %s28, %s42
      %p69 = scmp.eq.s32.totalorder %s68, 0
      %s71 = sadd.s32 %s70, 1
      %s72 = scalar_select %p69, %s70, %s71
      %p75 = pneg %p69
      %p76 = scmp.eq.s32.totalorder %s20, 3
      %p77 = por %p75, %p76
      %p78 = scmp.ne.s32.totalorder %s70, %s73
      %p79 = scmp.eq.s32.totalorder %s20, 0
      %p80 = por %p78, %p79
      %p81 = scmp.ne.s32.totalorder %s70, %s73
      %p82 = scmp.eq.s32.totalorder %s25, 3
      %p83 = por %p81, %p82
      %p84 = scmp.ne.s32.totalorder %s73, %s74
      %p85 = scmp.eq.s32.totalorder %s25, 0
      %p86 = por %p84, %p85
      %p87 = scmp.ne.s32.totalorder %s73, %s74
      %p88 = scmp.eq.s32.totalorder %s26, 3
      %p89 = por %p87, %p88
      %p91 = scmp.ne.s32.totalorder %s74, %s90
      %p92 = scmp.eq.s32.totalorder %s26, 0
      %p93 = por %p91, %p92
      %s94 = smul.u32 %s27, 2
      %s95 = sadd.s32 %s94, %s29
      %s96 = smul.u32 %s46, 2
      %s97 = sadd.s32 %s96, %s38
      %s98 = ssub.s32 %s95, %s97
      %p99 = scmp.eq.s32.totalorder %s98, 0
      %s101 = sadd.s32 %s100, 1
      %s102 = scalar_select %p99, %s100, %s101
      %p105 = pneg %p99
      %p106 = scmp.eq.s32.totalorder %s20, 3
      %p107 = por %p105, %p106
      %p108 = scmp.ne.s32.totalorder %s100, %s103
      %p109 = scmp.eq.s32.totalorder %s20, 0
      %p110 = por %p108, %p109
      %p111 = scmp.ne.s32.totalorder %s100, %s103
      %p112 = scmp.eq.s32.totalorder %s25, 3
      %p113 = por %p111, %p112
      %p114 = scmp.ne.s32.totalorder %s103, %s104
      %p115 = scmp.eq.s32.totalorder %s25, 0
      %p116 = por %p114, %p115
      %p117 = scmp.ne.s32.totalorder %s103, %s104
      %p118 = scmp.eq.s32.totalorder %s26, 3
      %p119 = por %p117, %p118
      %p121 = scmp.ne.s32.totalorder %s104, %s120
      %p122 = scmp.eq.s32.totalorder %s26, 0
      %p123 = por %p121, %p122
      %s124 = smul.u32 %s27, 2
      %s125 = sadd.s32 %s124, %s29
      %s126 = smul.u32 %s46, 2
      %s127 = sadd.s32 %s126, %s38
      %s128 = ssub.s32 %s125, %s127
      %p129 = scmp.eq.s32.totalorder %s128, 0
      %s131 = sadd.s32 %s130, 1
      %s132 = scalar_select %p129, %s130, %s131
      %p135 = pneg %p129
      %p136 = scmp.eq.s32.totalorder %s20, 3
      %p137 = por %p135, %p136
      %p138 = scmp.ne.s32.totalorder %s130, %s133
      %p139 = scmp.eq.s32.totalorder %s20, 0
      %p140 = por %p138, %p139
      %p141 = scmp.ne.s32.totalorder %s130, %s133
      %p142 = scmp.eq.s32.totalorder %s25, 3
      %p143 = por %p141, %p142
      %p144 = scmp.ne.s32.totalorder %s133, %s134
      %p145 = scmp.eq.s32.totalorder %s25, 0
      %p146 = por %p144, %p145
      %p147 = scmp.ne.s32.totalorder %s133, %s134
      %p148 = scmp.eq.s32.totalorder %s26, 3
      %p149 = por %p147, %p148
      %p151 = scmp.ne.s32.totalorder %s134, %s150
      %p152 = scmp.eq.s32.totalorder %s26, 0
      %p153 = por %p151, %p152
      %s154 = ssub.s32 %s28, %s42
      %p155 = scmp.eq.s32.totalorder %s154, 0
      %s157 = sadd.s32 %s156, 1
      %s158 = scalar_select %p155, %s156, %s157
      %p161 = pneg %p155
      %p162 = scmp.eq.s32.totalorder %s20, 3
      %p163 = por %p161, %p162
      %p164 = scmp.ne.s32.totalorder %s156, %s159
      %p165 = scmp.eq.s32.totalorder %s20, 0
      %p166 = por %p164, %p165
      %p167 = scmp.ne.s32.totalorder %s156, %s159
      %p168 = scmp.eq.s32.totalorder %s25, 3
      %p169 = por %p167, %p168
      %p170 = scmp.ne.s32.totalorder %s159, %s160
      %p171 = scmp.eq.s32.totalorder %s25, 0
      %p172 = por %p170, %p171
      %p173 = scmp.ne.s32.totalorder %s159, %s160
      %p174 = scmp.eq.s32.totalorder %s26, 3
      %p175 = por %p173, %p174
      %p177 = scmp.ne.s32.totalorder %s160, %s176
      %p178 = scmp.eq.s32.totalorder %s26, 0
      %p179 = por %p177, %p178
      %s180 = ssub.s32 %s27, %s46
      %s181 = ssub.s32 %s28, %s42
      %s182 = sor.u32 %s180, %s181
      %p183 = scmp.eq.s32.totalorder %s182, 0
      %s185 = sadd.s32 %s184, 1
      %s186 = scalar_select %p183, %s184, %s185
      %p189 = pneg %p183
      %p190 = scmp.eq.s32.totalorder %s20, 3
      %p191 = por %p189, %p190
      %p192 = scmp.ne.s32.totalorder %s184, %s187
      %p193 = scmp.eq.s32.totalorder %s20, 0
      %p194 = por %p192, %p193
      %p195 = scmp.ne.s32.totalorder %s184, %s187
      %p196 = scmp.eq.s32.totalorder %s25, 3
      %p197 = por %p195, %p196
      %p198 = scmp.ne.s32.totalorder %s187, %s188
      %p199 = scmp.eq.s32.totalorder %s25, 0
      %p200 = por %p198, %p199
      %p201 = scmp.ne.s32.totalorder %s187, %s188
      %p202 = scmp.eq.s32.totalorder %s26, 3
      %p203 = por %p201, %p202
      %p205 = scmp.ne.s32.totalorder %s188, %s204
      %p206 = scmp.eq.s32.totalorder %s26, 0
      %p207 = por %p205, %p206
      %p208 = scmp.le.s32.totalorder 1, %s20
      %p209 = scmp.lt.s32.totalorder %s20, 5
      %p210 = pnand %p208, %p209
      %p211 = pneg %p210
      // Predicated region
      $region9: #{tpu_custom_call.1} parent=5 // pred_check
        _
      $region10: #{tpu_custom_call.1} parent=5 // pred_check_branch
        %213 = sbr.rel (%p210) target = $region12
      $region11: #{tpu_custom_call.1} parent=5 // pred_region
        %s214 = ssub.s32 %s20, 1
        // Predicated region
        $region13: #{tpu_custom_call.1} parent=11 // pred_check
          %p215 = pneg %p60
        $region14: #{tpu_custom_call.1} parent=11 // pred_check_branch
          %217 = sbr.rel (%p215) target = $region16
        $region15: #{tpu_custom_call.1} parent=11 // pred_region
          %s219 = ssub.s32 16, 16
          %220 = vsyncadd [#allocation5], %s219
          %223 = dma.hbm_to_smem %s0, 16, [#allocation2], [#allocation5]
        $region16: #{tpu_custom_call.1} parent=11 // pred_fallthru
          _
        // Predicated region
        $region17: #{tpu_custom_call.1} parent=11 // pred_check
          %p224 = pneg %p86
        $region18: #{tpu_custom_call.1} parent=11 // pred_check_branch
          %226 = sbr.rel (%p224) target = $region20
        $region19: #{tpu_custom_call.1} parent=11 // pred_region
          %s227 = smul.u32 2, %s31
          %s229 = ssub.s32 256, 256
          %230 = vsyncadd [#allocation3], %s229
          %s231 = smul.addr %s227, 2
          %s232 = smul.addr %s231, 64
          %s233 = scalar_lea.hbm %s1, %s232
          %s234 = sshll.u32 [#allocation6], 4
          %s235 = int_to_ptr.vmem [resolvable:$true] %s234
          %240 = dma.hbm_to_vmem [thread:$0]  %s233, 256, %s235, [#allocation3], 128, 128, 8
        $region20: #{tpu_custom_call.1} parent=11 // pred_fallthru
          _
        // Predicated region
        $region21: #{tpu_custom_call.1} parent=11 // pred_check
          %p241 = pneg %p172
        $region22: #{tpu_custom_call.1} parent=11 // pred_check_branch
          %243 = sbr.rel (%p241) target = $region24
        $region23: #{tpu_custom_call.1} parent=11 // pred_region
          %s244 = smul.u32 2, %s31
          %s246 = ssub.s32 256, 256
          %247 = vsyncadd [#allocation11], %s246
          %s248 = smul.addr %s244, 128
          %s249 = scalar_lea.hbm %s4, %s248
          %s250 = sshll.u32 [#allocation10], 4
          %s251 = int_to_ptr.vmem [resolvable:$true] %s250
          %256 = dma.hbm_to_vmem [thread:$0]  %s249, 256, %s251, [#allocation11], 128, 128, 8
        $region24: #{tpu_custom_call.1} parent=11 // pred_fallthru
          _
      $region12: #{tpu_custom_call.1} parent=5 // pred_fallthru
        _
      %p257 = scmp.lt.s32.totalorder %s20, 4
      // Predicated region
      $region25: #{tpu_custom_call.1} parent=5 // pred_check
        %p258 = pneg %p257
      $region26: #{tpu_custom_call.1} parent=5 // pred_check_branch
        %260 = sbr.rel (%p258) target = $region28
      $region27: #{tpu_custom_call.1} parent=5 // pred_region
        // Predicated region
        $region29: #{tpu_custom_call.1} parent=27 // pred_check
          %p261 = pneg %p110
        $region30: #{tpu_custom_call.1} parent=27 // pred_check_branch
          %263 = sbr.rel (%p261) target = $region32
        $region31: #{tpu_custom_call.1} parent=27 // pred_region
          %s264 = sand.u32 %s20, 1
          %s265 = scalar_lea.sflag [#allocation8], %s264
          %s266 = sand.u32 %s100, 1
          %s267 = smul.addr %s266, 128
          %s268 = scalar_lea.vmem [#allocation7], %s267
          %s269 = smul.u32 %s27, 2
          %s270 = sadd.s32 %s269, %s29
          %s272 = ssub.s32 2048, 2048
          %273 = vsyncadd %s265, %s272
          %s274 = smul.addr %s270, 64
          %s275 = scalar_lea.hbm %s2, %s274
          %s276 = sshll.u32 %s268, 4
          %s277 = int_to_ptr.vmem [resolvable:$true] %s276
          %282 = dma.hbm_to_vmem [thread:$0]  %s275, 2048, %s277, %s265, 256, 64, 4
        $region32: #{tpu_custom_call.1} parent=27 // pred_fallthru
          _
        // Predicated region
        $region33: #{tpu_custom_call.1} parent=27 // pred_check
          %p283 = pneg %p140
        $region34: #{tpu_custom_call.1} parent=27 // pred_check_branch
          %285 = sbr.rel (%p283) target = $region36
        $region35: #{tpu_custom_call.1} parent=27 // pred_region
          %s286 = sand.u32 %s20, 1
          %s287 = scalar_lea.sflag [#allocation8], %s286
          %s288 = sand.u32 %s130, 1
          %s289 = smul.addr %s288, 32
          %s290 = scalar_lea.vmem [#allocation9], %s289
          %s291 = smul.u32 %s27, 2
          %s292 = sadd.s32 %s291, %s29
          %s293 = smul.u32 4, %s292
          %s295 = ssub.s32 512, 512
          %296 = vsyncadd %s287, %s295
          %s297 = smul.addr %s293, 128
          %s298 = scalar_lea.hbm %s3, %s297
          %s299 = sshll.u32 %s290, 4
          %s300 = int_to_ptr.vmem [resolvable:$true] %s299
          %305 = dma.hbm_to_vmem [thread:$0]  %s298, 512, %s300, %s287, 128, 128, 8
        $region36: #{tpu_custom_call.1} parent=27 // pred_fallthru
          _
      $region28: #{tpu_custom_call.1} parent=5 // pred_fallthru
        _
      %p306 = scmp.le.s32.totalorder 1, %s20
      %p307 = scmp.lt.s32.totalorder %s20, 5
      %p308 = pnand %p306, %p307
      %p309 = pneg %p308
      // Predicated region
      $region37: #{tpu_custom_call.1} parent=5 // pred_check
        _
      $region38: #{tpu_custom_call.1} parent=5 // pred_check_branch
        %311 = sbr.rel (%p308) target = $region40
      $region39: #{tpu_custom_call.1} parent=5 // pred_region
        %s312 = ssub.s32 %s20, 1
        // Predicated region
        $region41: #{tpu_custom_call.1} parent=39 // pred_check
          %p313 = pneg %p60
        $region42: #{tpu_custom_call.1} parent=39 // pred_check_branch
          %315 = sbr.rel (%p313) target = $region44
        $region43: #{tpu_custom_call.1} parent=39 // pred_region
          %316 = dma.done [#allocation5], 16
        $region44: #{tpu_custom_call.1} parent=39 // pred_fallthru
          _
        // Predicated region
        $region45: #{tpu_custom_call.1} parent=39 // pred_check
          %p317 = pneg %p86
        $region46: #{tpu_custom_call.1} parent=39 // pred_check_branch
          %319 = sbr.rel (%p317) target = $region48
        $region47: #{tpu_custom_call.1} parent=39 // pred_region
          %320 = dma.done [#allocation3], 256
        $region48: #{tpu_custom_call.1} parent=39 // pred_fallthru
          _
        %s321 = sand.u32 %s25, 1
        %s322 = scalar_lea.sflag [#allocation8], %s321
        %s323 = sand.u32 %s103, 1
        %s324 = smul.addr %s323, 128
        %s325 = scalar_lea.vmem [#allocation7], %s324
        // Predicated region
        $region49: #{tpu_custom_call.1} parent=39 // pred_check
          %p326 = pneg %p116
        $region50: #{tpu_custom_call.1} parent=39 // pred_check_branch
          %328 = sbr.rel (%p326) target = $region52
        $region51: #{tpu_custom_call.1} parent=39 // pred_region
          %329 = dma.done %s322, 2048
        $region52: #{tpu_custom_call.1} parent=39 // pred_fallthru
          _
        %s330 = sand.u32 %s25, 1
        %s331 = scalar_lea.sflag [#allocation8], %s330
        %s332 = sand.u32 %s133, 1
        %s333 = smul.addr %s332, 32
        %s334 = scalar_lea.vmem [#allocation9], %s333
        // Predicated region
        $region53: #{tpu_custom_call.1} parent=39 // pred_check
          %p335 = pneg %p146
        $region54: #{tpu_custom_call.1} parent=39 // pred_check_branch
          %337 = sbr.rel (%p335) target = $region56
        $region55: #{tpu_custom_call.1} parent=39 // pred_region
          %338 = dma.done %s331, 512
        $region56: #{tpu_custom_call.1} parent=39 // pred_fallthru
          _
        // Predicated region
        $region57: #{tpu_custom_call.1} parent=39 // pred_check
          %p339 = pneg %p172
        $region58: #{tpu_custom_call.1} parent=39 // pred_check_branch
          %341 = sbr.rel (%p339) target = $region60
        $region59: #{tpu_custom_call.1} parent=39 // pred_region
          %342 = dma.done [#allocation11], 256
        $region60: #{tpu_custom_call.1} parent=39 // pred_fallthru
          _
        %343 = sfence
        %p344 = pneg %p60
        %p345 = pneg %p57
        %p346 = pneg %p86
        %p347 = pneg %p83
        %s348 = sand.u32 %s25, 1
        %s349 = scalar_lea.sflag [#allocation8], %s348
        %s350 = sand.u32 %s103, 1
        %s351 = smul.addr %s350, 128
        %s352 = scalar_lea.vmem [#allocation7], %s351
        %p353 = pneg %p116
        %p354 = pneg %p113
        %s355 = sand.u32 %s25, 1
        %s356 = scalar_lea.sflag [#allocation8], %s355
        %s357 = sand.u32 %s133, 1
        %s358 = smul.addr %s357, 32
        %s359 = scalar_lea.vmem [#allocation9], %s358
        %p360 = pneg %p146
        %p361 = pneg %p143
        %p362 = pneg %p172
        %p363 = pneg %p169
        %p364 = pneg %p200
        %p365 = pneg %p197
        %s366 = sand.u32 %s187, 1
        %s367 = scalar_lea.sflag [#allocation4], %s366
        %s368 = sand.u32 %s187, 1
        %s369 = smul.addr %s368, 16
        %s370 = scalar_lea.vmem [#allocation12], %s369
        %s371 = smul.u32 2, %s31
        %s372 = smul.u32 %s30, 2
        %s373 = sadd.s32 %s372, %s32
        %s374 = smul.u32 %s30, 2
        %s375 = sadd.s32 %s374, %s32
        %s376 = smul.u32 4, %s375
        %s377 = smul.u32 2, %s31
        %s378 = smul.u32 2, %s31
        %s380 = sld [smem:[#allocation2]]
        %s381 = sld [smem:[#allocation2 + $0x1]]
        %p382 = scmp.eq.s32.totalorder %s32, 0
        // Predicated region
        $region61: #{tpu_custom_call.1} parent=39 // pred_check
          %p383 = pneg %p382
        $region62: #{tpu_custom_call.1} parent=39 // pred_check_branch
          %385 = sbr.rel (%p383) target = $region64
        $region63: #{tpu_custom_call.1} parent=39 // pred_region
          %386 = vst [vmem:[%s370] sm:$0xff] 0.0
          %387 = vst [vmem:[%s370 + $0x8] sm:$0xff] 0.0
        $region64: #{tpu_custom_call.1} parent=39 // pred_fallthru
          _
        %p388 = scmp.eq.s32.totalorder %s30, 0
        %p389 = pnand %p382, %p388
        %p390 = pneg %p389
        // Predicated region
        $region65: #{tpu_custom_call.1} parent=39 // pred_check
          _
        $region66: #{tpu_custom_call.1} parent=39 // pred_check_branch
          %392 = sbr.rel (%p389) target = $region68
        $region67: #{tpu_custom_call.1} parent=39 // pred_region
          %v393 = vld [vmem:[%s370] sm:$0xff]
          %v394 = vld [vmem:[%s370 + $0x8] sm:$0xff]
          %v395 = vld [vmem:[#allocation10] sm:$0xff]
          %v396 = vld [vmem:[#allocation10 + $0x8] sm:$0xff]
          %v397 = vadd.f32 %v393, %v395
          %v398 = vadd.f32 %v394, %v396
          %399 = vst [vmem:[%s370] sm:$0xff] %v397
          %400 = vst [vmem:[%s370 + $0x8] sm:$0xff] %v398
        $region68: #{tpu_custom_call.1} parent=39 // pred_fallthru
          _
        %v401 = vld [vmem:[#allocation6] sm:$0xff]
        %v402 = vld [vmem:[#allocation6 + $0x8] sm:$0xff]
        %v403 = vld [vmem:[%s325] sm:$0xf]
        %v404 = vld [vmem:[%s325 + $0x4] sm:$0xf]
        %v405 = vld [vmem:[%s325 + $0x8] sm:$0xf]
        %v406 = vld [vmem:[%s325 + $0xc] sm:$0xf]
        %v407 = vld [vmem:[%s325 + $0x10] sm:$0xf]
        %v408 = vld [vmem:[%s325 + $0x14] sm:$0xf]
        %v409 = vld [vmem:[%s325 + $0x18] sm:$0xf]
        %v410 = vld [vmem:[%s325 + $0x1c] sm:$0xf]
        %v411 = vld [vmem:[%s325 + $0x20] sm:$0xf]
        %v412 = vld [vmem:[%s325 + $0x24] sm:$0xf]
        %v413 = vld [vmem:[%s325 + $0x28] sm:$0xf]
        %v414 = vld [vmem:[%s325 + $0x2c] sm:$0xf]
        %v415 = vld [vmem:[%s325 + $0x30] sm:$0xf]
        %v416 = vld [vmem:[%s325 + $0x34] sm:$0xf]
        %v417 = vld [vmem:[%s325 + $0x38] sm:$0xf]
        %v418 = vld [vmem:[%s325 + $0x3c] sm:$0xf]
        %v419 = vld [vmem:[%s325 + $0x40] sm:$0xf]
        %v420 = vld [vmem:[%s325 + $0x44] sm:$0xf]
        %v421 = vld [vmem:[%s325 + $0x48] sm:$0xf]
        %v422 = vld [vmem:[%s325 + $0x4c] sm:$0xf]
        %v423 = vld [vmem:[%s325 + $0x50] sm:$0xf]
        %v424 = vld [vmem:[%s325 + $0x54] sm:$0xf]
        %v425 = vld [vmem:[%s325 + $0x58] sm:$0xf]
        %v426 = vld [vmem:[%s325 + $0x5c] sm:$0xf]
        %v427 = vld [vmem:[%s325 + $0x60] sm:$0xf]
        %v428 = vld [vmem:[%s325 + $0x64] sm:$0xf]
        %v429 = vld [vmem:[%s325 + $0x68] sm:$0xf]
        %v430 = vld [vmem:[%s325 + $0x6c] sm:$0xf]
        %v431 = vld [vmem:[%s325 + $0x70] sm:$0xf]
        %v432 = vld [vmem:[%s325 + $0x74] sm:$0xf]
        %v433 = vld [vmem:[%s325 + $0x78] sm:$0xf]
        %v434 = vld [vmem:[%s325 + $0x7c] sm:$0xf]
        %v437 = vunpack.c.l.b16 %v401
        %v438 = vunpack.c.h.b16 %v401
        %v439 = vunpack.c.l.b16 %v402
        %v440 = vunpack.c.h.b16 %v402
        %v441 = vpack.c.b16 %v439, %v437
        %v442 = vpack.c.b16 %v440, %v438
        %v477 = vunpack.c.l.b16 %v403
        %v478 = vunpack.c.l.b16 %v404
        %v479 = vunpack.c.l.b16 %v405
        %v480 = vunpack.c.l.b16 %v406
        %v481 = vunpack.c.l.b16 %v407
        %v482 = vunpack.c.l.b16 %v408
        %v483 = vunpack.c.l.b16 %v409
        %v484 = vunpack.c.l.b16 %v410
        %v485 = vunpack.c.l.b16 %v411
        %v486 = vunpack.c.l.b16 %v412
        %v487 = vunpack.c.l.b16 %v413
        %v488 = vunpack.c.l.b16 %v414
        %v489 = vunpack.c.l.b16 %v415
        %v490 = vunpack.c.l.b16 %v416
        %v491 = vunpack.c.l.b16 %v417
        %v492 = vunpack.c.l.b16 %v418
        %v493 = vunpack.c.l.b16 %v419
        %v494 = vunpack.c.l.b16 %v420
        %v495 = vunpack.c.l.b16 %v421
        %v496 = vunpack.c.l.b16 %v422
        %v497 = vunpack.c.l.b16 %v423
        %v498 = vunpack.c.l.b16 %v424
        %v499 = vunpack.c.l.b16 %v425
        %v500 = vunpack.c.l.b16 %v426
        %v501 = vunpack.c.l.b16 %v427
        %v502 = vunpack.c.l.b16 %v428
        %v503 = vunpack.c.l.b16 %v429
        %v504 = vunpack.c.l.b16 %v430
        %v505 = vunpack.c.l.b16 %v431
        %v506 = vunpack.c.l.b16 %v432
        %v507 = vunpack.c.l.b16 %v433
        %v508 = vunpack.c.l.b16 %v434
        %v509 = vpack.c.b16 %v478, %v477
        %v510 = vpack.c.b16 %v480, %v479
        %v511 = vpack.c.b16 %v482, %v481
        %v512 = vpack.c.b16 %v484, %v483
        %v513 = vpack.c.b16 %v486, %v485
        %v514 = vpack.c.b16 %v488, %v487
        %v515 = vpack.c.b16 %v490, %v489
        %v516 = vpack.c.b16 %v492, %v491
        %v517 = vpack.c.b16 %v494, %v493
        %v518 = vpack.c.b16 %v496, %v495
        %v519 = vpack.c.b16 %v498, %v497
        %v520 = vpack.c.b16 %v500, %v499
        %v521 = vpack.c.b16 %v502, %v501
        %v522 = vpack.c.b16 %v504, %v503
        %v523 = vpack.c.b16 %v506, %v505
        %v524 = vpack.c.b16 %v508, %v507
        %541 = vmatprep.subr.bf16.mxu0 0
        %542 = vmatpush1.bf16.msra.mxu0 %v509
        %543 = vmatprep.subr.bf16.mxu0 0
        %544 = vmatpush1.bf16.msra.mxu0 %v510
        %545 = vmatprep.subr.bf16.mxu0 0
        %546 = vmatpush1.bf16.msra.mxu0 %v511
        %547 = vmatprep.subr.bf16.mxu0 0
        %548 = vmatpush1.bf16.msra.mxu0 %v512
        %549 = vmatprep.subr.bf16.mxu0 0
        %550 = vmatpush1.bf16.msra.mxu0 %v513
        %551 = vmatprep.subr.bf16.mxu0 0
        %552 = vmatpush1.bf16.msra.mxu0 %v514
        %553 = vmatprep.subr.bf16.mxu0 0
        %554 = vmatpush1.bf16.msra.mxu0 %v515
        %555 = vmatprep.subr.bf16.mxu0 0
        %556 = vmatpush1.bf16.msra.mxu0 %v516
        %557 = vmatprep.subr.bf16.mxu0 0
        %558 = vmatpush1.bf16.msra.mxu0 %v517
        %559 = vmatprep.subr.bf16.mxu0 0
        %560 = vmatpush1.bf16.msra.mxu0 %v518
        %561 = vmatprep.subr.bf16.mxu0 0
        %562 = vmatpush1.bf16.msra.mxu0 %v519
        %563 = vmatprep.subr.bf16.mxu0 0
        %564 = vmatpush1.bf16.msra.mxu0 %v520
        %565 = vmatprep.subr.bf16.mxu0 0
        %566 = vmatpush1.bf16.msra.mxu0 %v521
        %567 = vmatprep.subr.bf16.mxu0 0
        %568 = vmatpush1.bf16.msra.mxu0 %v522
        %569 = vmatprep.subr.bf16.mxu0 0
        %570 = vmatpush1.bf16.msra.mxu0 %v523
        %571 = vmatprep.subr.bf16.mxu0 0
        %572 = vmatpush1.bf16.msra.mxu0 %v524
        %573 = vmatprep.mubr.bf16.mxu0 %v442
        %574 = vmatmul.mubr.bf16.gmra.mrb[0].mxu0 %v441
        %v575 = vpop.f32.mrb[0].mxu0
        %v576 = vadd.f32 0.0, %v575
        %v577 = vpop.f32.mrb[0].mxu0
        %v578 = vpop.f32.mrb[0].mxu0
        %v579 = vadd.f32 0.0, %v578
        %v580 = vpop.f32.mrb[0].mxu0
        %581 = vdwg.mxu0
        %v582 = vstv %s380
        %v583 = vmul.f32 %v582, %v576
        %v584 = vmul.f32 %v582, %v579
        %v585 = vstv %s381
        %v586 = vadd.f32 %v583, %v585
        %v587 = vadd.f32 %v584, %v585
        %v588 = vmul.f32 %v586, 1.442695
        %v589 = vpow.pop %v588
        %v590 = vmul.f32 %v587, 1.442695
        %v591 = vpow.pop %v590
        %v592 = vpack.c.bf16 %v591, %v589
        %v593 = vld [vmem:[%s334] sm:$0xff]
        %v594 = vld [vmem:[%s334 + $0x8] sm:$0xff]
        %v595 = vld [vmem:[%s334 + $0x10] sm:$0xff]
        %v596 = vld [vmem:[%s334 + $0x18] sm:$0xff]
        %v597 = vunpack.c.l.s8.bf16 %v593
        %v598 = vunpack.c.h.s8.bf16 %v593
        %v599 = vunpack.c.l.s8.bf16 %v594
        %v600 = vunpack.c.h.s8.bf16 %v594
        %v601 = vunpack.c.l.s8.bf16 %v595
        %v602 = vunpack.c.h.s8.bf16 %v595
        %v603 = vunpack.c.l.s8.bf16 %v596
        %v604 = vunpack.c.h.s8.bf16 %v596
        %v605 = vld [vmem:[%s370] sm:$0xff]
        %v606 = vld [vmem:[%s370 + $0x8] sm:$0xff]
        %607 = vmatprep.subr.bf16.mxu0 0
        %608 = vmatpush1.bf16.msra.mxu0 %v597
        %609 = vmatprep.subr.bf16.mxu0 0
        %610 = vmatpush1.bf16.msra.mxu0 %v598
        %611 = vmatprep.subr.bf16.mxu0 0
        %612 = vmatpush1.bf16.msra.mxu0 %v599
        %613 = vmatprep.subr.bf16.mxu0 0
        %614 = vmatpush1.bf16.msra.mxu0 %v600
        %615 = vmatprep.subr.bf16.mxu0 0
        %616 = vmatpush1.bf16.msra.mxu0 %v601
        %617 = vmatprep.subr.bf16.mxu0 0
        %618 = vmatpush1.bf16.msra.mxu0 %v602
        %619 = vmatprep.subr.bf16.mxu0 0
        %620 = vmatpush1.bf16.msra.mxu0 %v603
        %621 = vmatprep.subr.bf16.mxu0 0
        %622 = vmatpush1.bf16.msra.mxu0 %v604
        %623 = vmatprep.subr.bf16.mxu0 0
        %624 = vmatpush1.bf16.msra.mxu0 0
        %625 = vmatprep.subr.bf16.mxu0 0
        %626 = vmatpush1.bf16.msra.mxu0 0
        %627 = vmatprep.subr.bf16.mxu0 0
        %628 = vmatpush1.bf16.msra.mxu0 0
        %629 = vmatprep.subr.bf16.mxu0 0
        %630 = vmatpush1.bf16.msra.mxu0 0
        %631 = vmatprep.subr.bf16.mxu0 0
        %632 = vmatpush1.bf16.msra.mxu0 0
        %633 = vmatprep.subr.bf16.mxu0 0
        %634 = vmatpush1.bf16.msra.mxu0 0
        %635 = vmatprep.subr.bf16.mxu0 0
        %636 = vmatpush1.bf16.msra.mxu0 0
        %637 = vmatprep.subr.bf16.mxu0 0
        %638 = vmatpush1.bf16.msra.mxu0 0
        %639 = vmatprep.mubr.bf16.mxu0 0
        %640 = vmatmul.mubr.bf16.gmra.mrb[0].mxu0 %v592
        %v641 = vpop.f32.mrb[0].mxu0
        %v642 = vadd.f32 0.0, %v641
        %v643 = vpop.f32.mrb[0].mxu0
        %v644 = vpop.f32.mrb[0].mxu0
        %v645 = vadd.f32 0.0, %v644
        %v646 = vpop.f32.mrb[0].mxu0
        %647 = vdwg.mxu0
        %v648 = vadd.f32 %v605, %v642
        %v649 = vadd.f32 %v606, %v645
        %650 = vst [vmem:[%s370] sm:$0xff] %v648
        %651 = vst [vmem:[%s370 + $0x8] sm:$0xff] %v649
        %s652 = sand.u32 %s187, 1
        %s653 = scalar_lea.sflag [#allocation4], %s652
        %s654 = sand.u32 %s187, 1
        %s655 = smul.addr %s654, 16
        %s656 = scalar_lea.vmem [#allocation12], %s655
        // Predicated region
        $region69: #{tpu_custom_call.1} parent=39 // pred_check
          %p657 = pneg %p197
        $region70: #{tpu_custom_call.1} parent=39 // pred_check_branch
          %659 = sbr.rel (%p657) target = $region72
        $region71: #{tpu_custom_call.1} parent=39 // pred_region
          %s660 = smul.u32 2, %s31
          %s662 = ssub.s32 256, 256
          %663 = vsyncadd %s653, %s662
          %s664 = smul.addr %s30, 2
          %s665 = sadd.s32 %s660, %s664
          %s666 = smul.addr %s665, 128
          %s667 = scalar_lea.hbm %s5, %s666
          %s668 = sshll.u32 %s656, 4
          %s669 = int_to_ptr.vmem [resolvable:$true] %s668
          %674 = dma.vmem_to_hbm [thread:$0]  %s669, 256, %s667, %s653, 128, 128, 8
        $region72: #{tpu_custom_call.1} parent=39 // pred_fallthru
          _
      $region40: #{tpu_custom_call.1} parent=5 // pred_fallthru
        _
      %p675 = scmp.le.s32.totalorder 2, %s20
      // Predicated region
      $region73: #{tpu_custom_call.1} parent=5 // pred_check
        %p676 = pneg %p675
      $region74: #{tpu_custom_call.1} parent=5 // pred_check_branch
        %678 = sbr.rel (%p676) target = $region76
      $region75: #{tpu_custom_call.1} parent=5 // pred_region
        %s679 = ssub.s32 %s20, 2
        // Predicated region
        $region77: #{tpu_custom_call.1} parent=75 // pred_check
          %p680 = pneg %p203
        $region78: #{tpu_custom_call.1} parent=75 // pred_check_branch
          %682 = sbr.rel (%p680) target = $region80
        $region79: #{tpu_custom_call.1} parent=75 // pred_region
          %s683 = sand.u32 %s188, 1
          %s684 = scalar_lea.sflag [#allocation4], %s683
          %s685 = sand.u32 %s188, 1
          %s686 = smul.addr %s685, 16
          %s687 = scalar_lea.vmem [#allocation12], %s686
          %688 = dma.done %s684, 256
        $region80: #{tpu_custom_call.1} parent=75 // pred_fallthru
          _
      $region76: #{tpu_custom_call.1} parent=5 // pred_fallthru
        _
    $region6: #{tpu_custom_call.1} parent=1 // loop_footer
      %s24 = sadd.s32 1, %s20
    $region7: #{tpu_custom_call.1} parent=1 // loop_footer_branch
      %19 = sbr.rel target = $region3
    $region8: #{tpu_custom_call.1} parent=1 // loop_exit
      _
    %689 = vsyncpa [#allocation3], 1
    %s690 = scalar_lea.sflag [#allocation3], 1
    %691 = vsyncpa %s690, 1
    %692 = vsyncpa [#allocation8], 1
    %s693 = scalar_lea.sflag [#allocation8], 1
    %694 = vsyncpa %s693, 1
    %695 = vsyncpa [#allocation11], 1
    %696 = vsyncpa [#allocation4], 1
    %s697 = scalar_lea.sflag [#allocation4], 1
    %698 = vsyncpa %s697, 1
    %699 = vsyncpa [#allocation5], 1
    %s700 = scalar_lea.sflag [#allocation5], 1
    %701 = vsyncpa %s700, 1

</llo_original>
